<compile_context>
chip_gen: v5e
topology: v5e:2x2
jax: 0.10.0
libtpu: 0.0.40
codegen_flags: <defaults>
</compile_context>

<pallas_src>
import functools

import jax
import jax.numpy as jnp
from jax.experimental import pallas as pl
from jax.experimental.pallas import tpu as pltpu

# 1x1-conv matmul operands in bf16 (MXU-native on v5e/v6e/v7x); f32 accumulate.
USE_BF16_MATMUL = True
# Contractions this small stay on the VPU (MXU would be ~idle).
_VPU_CIN_MAX = 8


# ----------------------------------------------------------------------------
# pltpu.roll direction probe (convention-proof, run once per process)
# ----------------------------------------------------------------------------
_ROLL_SIGN = None


def _roll_sign():
    """Returns s such that pltpu.roll(x, (s*shift) % n, axis=1)[:, q] == x[:, (q+shift) % n]."""
    global _ROLL_SIGN
    if _ROLL_SIGN is None:
        def probe(x_ref, o_ref):
            o_ref[...] = pltpu.roll(x_ref[...], 1, axis=1)

        x = jax.lax.broadcasted_iota(jnp.float32, (8, 128), 1)
        y = pl.pallas_call(
            probe, out_shape=jax.ShapeDtypeStruct((8, 128), jnp.float32))(x)
        _ROLL_SIGN = 1 if abs(float(y[0, 0]) - 1.0) < 0.5 else -1
    return _ROLL_SIGN


# ----------------------------------------------------------------------------
# In-kernel helpers (VMEM-resident values only)
# ----------------------------------------------------------------------------
def _pw_conv_bias(x, w_ref, b_ref, *, relu):
    """Fused 1x1 conv (BN scale pre-folded into w) + bias (+ReLU)."""
    w = w_ref[...]                                   # (Cout, Cin)
    cin = w.shape[1]
    if cin <= _VPU_CIN_MAX:
        # Tiny contraction: Cin broadcast-FMAs on the VPU, lane-dense output.
        y = w[:, 0:1] * x[0:1, :]
        for ci in range(1, cin):
            y = y + w[:, ci:ci + 1] * x[ci:ci + 1, :]
    else:
        # MXU path; weights are already bf16 when USE_BF16_MATMUL is on.
        y = jnp.dot(w, x.astype(w.dtype), preferred_element_type=jnp.float32)
    y = y + b_ref[...]                               # folded-BN bias, (C,1)
    return jnp.maximum(y, 0.0) if relu else y


def _dw3x3_bias(x, w_ref, b_ref, masks, taps, *, roll_sign, out_lanes):
    """9-tap depthwise conv on a flat lane layout.

    taps[k] = (shift, use_mask): tap k reads source lane (q + shift) mod n via
    an XLU roll; invalid sources (image / component / row / col boundaries,
    incl. wrap-around) are zeroed by the precomputed masks[k].  Weights carry
    the folded BN scale; bias is added at the end.  Returns acc[:, :out_lanes].
    """
    n = x.shape[1]
    w = w_ref[...]                                   # (C, 9)
    acc = None
    for k, (shift, use_mask) in enumerate(taps):
        amt = (roll_sign * shift) % n
        t = x if amt == 0 else pltpu.roll(x, amt, axis=1)
        if use_mask:
            t = t * masks[k:k + 1, :]
        t = t * w[:, k:k + 1]
        acc = t if acc is None else acc + t
    if out_lanes != n:
        acc = acc[:, :out_lanes]
    return acc + b_ref[...]


# ----------------------------------------------------------------------------
# Fused block kernels (one pallas_call per forward pass)
# ----------------------------------------------------------------------------
def _inverted_residual_s1_kernel(x_ref, masks_ref,
                                 pw1_w, pw1_b, dw_w, dw_b, pw2_w, pw2_b,
                                 o_ref, *, bf, taps, roll_sign, b_tile):
    masks = masks_ref[...]
    for i in range(b_tile):
        x = x_ref[i].astype(jnp.float32)             # (2*bf, H*W)
        x1, x2 = x[:bf, :], x[bf:, :]
        y = _pw_conv_bias(x2, pw1_w, pw1_b, relu=True)
        y = _dw3x3_bias(y, dw_w, dw_b, masks, taps,
                        roll_sign=roll_sign, out_lanes=y.shape[1])
        y = _pw_conv_bias(y, pw2_w, pw2_b, relu=True)
        # concat([x1, y]) + channel_shuffle(2) == out[2j]=x1[j], out[2j+1]=y[j];
        # written lane-dense as (bf, 2*H*W): one unmasked >=128-lane store.
        o_ref[i] = jnp.concatenate([x1, y], axis=1).astype(o_ref.dtype)


def _inverted_residual_s2_kernel(xp_ref, masks_ref,
                                 b1_dw_w, b1_dw_b, b1_pw_w, b1_pw_b,
                                 pw1_w, pw1_b, dw_w, dw_b, pw2_w, pw2_b,
                                 o_ref, *, p, taps, roll_sign, b_tile):
    masks = masks_ref[...]
    for i in range(b_tile):
        z = xp_ref[i].astype(jnp.float32)            # (Cin, 4*P) lane-fused polyphase
        # branch1: dw3x3(stride 2)+BN -> 1x1+BN+ReLU
        t = _dw3x3_bias(z, b1_dw_w, b1_dw_b, masks, taps,
                        roll_sign=roll_sign, out_lanes=p)
        x1 = _pw_conv_bias(t, b1_pw_w, b1_pw_b, relu=True)
        # branch2: 1x1+BN+ReLU (one matmul over all 4 polyphase components)
        #          -> dw3x3(stride 2)+BN -> 1x1+BN+ReLU
        y = _pw_conv_bias(z, pw1_w, pw1_b, relu=True)
        y = _dw3x3_bias(y, dw_w, dw_b, masks, taps,
                        roll_sign=roll_sign, out_lanes=p)
        x2 = _pw_conv_bias(y, pw2_w, pw2_b, relu=True)
        o_ref[i] = jnp.concatenate([x1, x2], axis=1).astype(o_ref.dtype)


# ----------------------------------------------------------------------------
# Static tap / mask construction
# ----------------------------------------------------------------------------
def _s1_taps(w):
    taps = []
    for dh in (-1, 0, 1):
        for dc in (-1, 0, 1):
            taps.append((dh * w + dc, not (dh == 0 and dc == 0)))
    return tuple(taps)


def _make_s1_masks(h, w):
    idx = jnp.arange(h * w, dtype=jnp.int32)
    r, c = idx // w, idx % w
    rows = []
    for dh in (-1, 0, 1):
        for dc in (-1, 0, 1):
            ok = (r + dh >= 0) & (r + dh < h) & (c + dc >= 0) & (c + dc < w)
            rows.append(ok)
    return jnp.stack(rows).astype(jnp.float32)       # (9, H*W)


def _s2_taps(p, wo):
    # comp index g = 2*pr+pc holds x[2a+pr, 2b+pc]; the stride-2 conv becomes
    # 9 stride-1 rolls of the lane-fused (Cin, 4*P) layout.
    taps = []
    for dh in (-1, 0, 1):
        for dc in (-1, 0, 1):
            pr, rs = (1, -1) if dh == -1 else (dh, 0)
            pc, cs = (1, -1) if dc == -1 else (dc, 0)
            taps.append(((2 * pr + pc) * p + rs * wo + cs,
                         (rs == -1) or (cs == -1)))
    return tuple(taps)


def _make_s2_masks(ho, wo):
    p = ho * wo
    idx = jnp.arange(4 * p, dtype=jnp.int32) % p
    a, b = idx // wo, idx % wo
    rows = []
    for dh in (-1, 0, 1):
        for dc in (-1, 0, 1):
            ok = jnp.ones((4 * p,), jnp.bool_)
            if dh == -1:
                ok = ok & (a >= 1)
            if dc == -1:
                ok = ok & (b >= 1)
            rows.append(ok)
    return jnp.stack(rows).astype(jnp.float32)       # (9, 4*P)


# ----------------------------------------------------------------------------
# Wrapper-side prep (BN folding, operand dtypes, specs, tiling heuristics)
# ----------------------------------------------------------------------------
def _prep_pw(w, bn):
    """Fold BN scale into the 1x1 weights; keep the bias as a (C,1) operand."""
    s, b = bn
    wf = w.astype(jnp.float32) * s.astype(jnp.float32)[:, None]
    if USE_BF16_MATMUL and w.shape[1] > _VPU_CIN_MAX:
        wf = wf.astype(jnp.bfloat16)                 # MXU-native operand dtype
    return wf, b.astype(jnp.float32).reshape(-1, 1)


def _prep_dw(w, bn):
    """Fold BN scale into the per-tap depthwise weights: (C,3,3) -> (C,9)."""
    s, b = bn
    c = w.shape[0]
    wf = w.reshape(c, 9).astype(jnp.float32) * s.astype(jnp.float32)[:, None]
    return wf, b.astype(jnp.float32).reshape(c, 1)


def _const_spec(shape):
    rank = len(shape)
    return pl.BlockSpec(shape, lambda b, _r=rank: (0,) * _r)


def _pick_batch_tile(n):
    """Images per grid step: amortize per-step overhead but keep grid >= 2."""
    for d in (4, 3, 2):
        if n % d == 0 and n // d >= 2:
            return d, n // d
    return 1, n


_COMPILER_PARAMS = None


def _compiler_params():
    global _COMPILER_PARAMS
    if _COMPILER_PARAMS is None:
        try:
            cap = int(pltpu.get_tpu_info().vmem_capacity_bytes)
        except Exception:
            cap = 128 * 1024 * 1024
        # ~3/4 of physical VMEM as the scoped limit (v7x: 64->48 MiB;
        # v5e/v6e: 128->96 MiB), floored at the old 32 MiB budget.
        vmem = max(32 * 1024 * 1024, min((cap * 3) // 4, 96 * 1024 * 1024))
        _COMPILER_PARAMS = pltpu.CompilerParams(
            dimension_semantics=("parallel",),       # batch grid across TCs
            vmem_limit_bytes=vmem,
        )
    return _COMPILER_PARAMS


# ----------------------------------------------------------------------------
# Forward wrappers (reshapes + one pallas_call; all compute is in the kernel)
# ----------------------------------------------------------------------------
def _forward_stride1(x_nchw, params):
    n, c, h, w = x_nchw.shape
    bf = c // 2
    hw = h * w
    b_tile, n_tiles = _pick_batch_tile(n)
    x_flat = x_nchw.reshape(n, c, hw)                # free NCHW reshape

    masks = _make_s1_masks(h, w)
    taps = _s1_taps(w)

    pw1_w, pw1_b = _prep_pw(params["b2_pw1_w"], params["b2_pw1_bn"])
    dw_w, dw_b = _prep_dw(params["b2_dw_w"], params["b2_dw_bn"])
    pw2_w, pw2_b = _prep_pw(params["b2_pw2_w"], params["b2_pw2_bn"])

    operands = (x_flat, masks, pw1_w, pw1_b, dw_w, dw_b, pw2_w, pw2_b)
    in_specs = [pl.BlockSpec((b_tile, c, hw), lambda b: (b, 0, 0))]
    in_specs += [_const_spec(op.shape) for op in operands[1:]]

    out = pl.pallas_call(
        functools.partial(_inverted_residual_s1_kernel, bf=bf, taps=taps,
                          roll_sign=_roll_sign(), b_tile=b_tile),
        out_shape=jax.ShapeDtypeStruct((n, bf, 2 * hw), x_nchw.dtype),
        grid=(n_tiles,),
        in_specs=in_specs,
        out_specs=pl.BlockSpec((b_tile, bf, 2 * hw), lambda b: (b, 0, 0)),
        compiler_params=_compiler_params(),
    )(*operands)
    # (n, bf, 2*hw) -> (n, 2*bf, h, w): free reshape realizing channel_shuffle.
    return out.reshape(n, 2 * bf, h, w)


def _forward_stride2(x_nchw, params):
    n, cin, h, w = x_nchw.shape
    assert h % 2 == 0 and w % 2 == 0
    ho, wo = h // 2, w // 2
    p = ho * wo
    bf = params["b2_pw2_w"].shape[0]
    b_tile, n_tiles = _pick_batch_tile(n)

    # Polyphase split, lane-fused: xp[n, c, (2*pr+pc)*p + a*wo + b] = x[n, c, 2a+pr, 2b+pc].
    # NOTE: this transpose is a real HBM relayout of the input (extra read+write),
    # accepted knowingly at these block sizes.
    # TODO(synk): pull the strided polyphase gather into the kernel (strided
    # lane slices / manual DMA from a pl.ANY ref) to remove the extra HBM pass.
    xp = x_nchw.reshape(n, cin, ho, 2, wo, 2)
    xp = xp.transpose(0, 1, 3, 5, 2, 4).reshape(n, cin, 4 * p)

    masks = _make_s2_masks(ho, wo)
    taps = _s2_taps(p, wo)

    b1_dw_w, b1_dw_b = _prep_dw(params["b1_dw_w"], params["b1_dw_bn"])
    b1_pw_w, b1_pw_b = _prep_pw(params["b1_pw_w"], params["b1_pw_bn"])
    pw1_w, pw1_b = _prep_pw(params["b2_pw1_w"], params["b2_pw1_bn"])
    dw_w, dw_b = _prep_dw(params["b2_dw_w"], params["b2_dw_bn"])
    pw2_w, pw2_b = _prep_pw(params["b2_pw2_w"], params["b2_pw2_bn"])

    operands = (xp, masks, b1_dw_w, b1_dw_b, b1_pw_w, b1_pw_b,
                pw1_w, pw1_b, dw_w, dw_b, pw2_w, pw2_b)
    in_specs = [pl.BlockSpec((b_tile, cin, 4 * p), lambda b: (b, 0, 0))]
    in_specs += [_const_spec(op.shape) for op in operands[1:]]

    out = pl.pallas_call(
        functools.partial(_inverted_residual_s2_kernel, p=p, taps=taps,
                          roll_sign=_roll_sign(), b_tile=b_tile),
        out_shape=jax.ShapeDtypeStruct((n, bf, 2 * p), x_nchw.dtype),
        grid=(n_tiles,),
        in_specs=in_specs,
        out_specs=pl.BlockSpec((b_tile, bf, 2 * p), lambda b: (b, 0, 0)),
        compiler_params=_compiler_params(),
    )(*operands)
    return out.reshape(n, 2 * bf, ho, wo)


def inverted_residual_forward(x_nchw, params, stride):
    assert stride in (1, 2)
    if stride == 1:
        return _forward_stride1(x_nchw, params)
    return _forward_stride2(x_nchw, params)


# ----------------------------------------------------------------------------
# Deterministic parameter init (shapes per the module's __init__)
# ----------------------------------------------------------------------------
def init_params(key, in_channel, out_channel, stride):
    assert out_channel % 2 == 0
    bf = out_channel // 2
    assert stride != 1 or in_channel == bf * 2
    keys = iter(jax.random.split(key, 64))

    def conv1x1(cout, cin):
        return jax.random.normal(next(keys), (cout, cin), jnp.float32) / jnp.sqrt(float(cin))

    def dw3x3(c):
        return jax.random.normal(next(keys), (c, 3, 3), jnp.float32) / 3.0

    def bn(c):
        eps = 1e-5
        gamma = 1.0 + 0.1 * jax.random.normal(next(keys), (c,), jnp.float32)
        beta = 0.1 * jax.random.normal(next(keys), (c,), jnp.float32)
        mean = 0.1 * jax.random.normal(next(keys), (c,), jnp.float32)
        var = 0.5 + jnp.abs(jax.random.normal(next(keys), (c,), jnp.float32))
        scale = gamma / jnp.sqrt(var + eps)
        bias = beta - mean * scale
        return scale, bias

    params = {}
    if stride == 2:
        params["b1_dw_w"] = dw3x3(in_channel)
        params["b1_dw_bn"] = bn(in_channel)
        params["b1_pw_w"] = conv1x1(bf, in_channel)
        params["b1_pw_bn"] = bn(bf)
    c2_in = in_channel if stride > 1 else bf
    params["b2_pw1_w"] = conv1x1(bf, c2_in)
    params["b2_pw1_bn"] = bn(bf)
    params["b2_dw_w"] = dw3x3(bf)
    params["b2_dw_bn"] = bn(bf)
    params["b2_pw2_w"] = conv1x1(bf, bf)
    params["b2_pw2_bn"] = bn(bf)
    return params


# ----------------------------------------------------------------------------
# Pure-JAX reference (NCHW, matches the PyTorch module) for correctness check
# ----------------------------------------------------------------------------
def _ref_pw(x, w, bn, relu):
    s, b = bn
    y = jax.lax.conv_general_dilated(
        x, w[:, :, None, None], (1, 1), "VALID",
        dimension_numbers=("NCHW", "OIHW", "NCHW"),
        precision=jax.lax.Precision.HIGHEST)
    y = y * s[None, :, None, None] + b[None, :, None, None]
    return jnp.maximum(y, 0.0) if relu else y


def _ref_dw(x, w, bn, stride):
    s, b = bn
    c = x.shape[1]
    y = jax.lax.conv_general_dilated(
        x, w[:, None, :, :], (stride, stride), ((1, 1), (1, 1)),
        dimension_numbers=("NCHW", "OIHW", "NCHW"),
        feature_group_count=c,
        precision=jax.lax.Precision.HIGHEST)
    return y * s[None, :, None, None] + b[None, :, None, None]


def _ref_channel_shuffle(x, groups):
    n, c, h, w = x.shape
    x = x.reshape(n, groups, c // groups, h, w)
    x = jnp.swapaxes(x, 1, 2)
    return x.reshape(n, c, h, w)


def ref_forward(x, params, stride):
    if stride == 1:
        bf = x.shape[1] // 2
        x1, x2 = x[:, :bf], x[:, bf:]
        x2 = _ref_pw(x2, params["b2_pw1_w"], params["b2_pw1_bn"], relu=True)
        x2 = _ref_dw(x2, params["b2_dw_w"], params["b2_dw_bn"], stride=1)
        x2 = _ref_pw(x2, params["b2_pw2_w"], params["b2_pw2_bn"], relu=True)
        res = jnp.concatenate([x1, x2], axis=1)
    else:
        x1 = _ref_dw(x, params["b1_dw_w"], params["b1_dw_bn"], stride=2)
        x1 = _ref_pw(x1, params["b1_pw_w"], params["b1_pw_bn"], relu=True)
        x2 = _ref_pw(x, params["b2_pw1_w"], params["b2_pw1_bn"], relu=True)
        x2 = _ref_dw(x2, params["b2_dw_w"], params["b2_dw_bn"], stride=2)
        x2 = _ref_pw(x2, params["b2_pw2_w"], params["b2_pw2_bn"], relu=True)
        res = jnp.concatenate([x1, x2], axis=1)
    return _ref_channel_shuffle(res, 2)


if __name__ == "__main__":
    key = jax.random.PRNGKey(0)
    k_x, k_x2, k_x3, k_p1, k_p2, k_p3, k_p4 = jax.random.split(key, 7)

    # PyTorch-style NCHW input: (batch=2, channels=4, H=16, W=16)
    x = jax.random.normal(k_x, (2, 4, 16, 16), jnp.float32)

    # Case 1: stride=1, tiny channels (exact f32 VPU pointwise path).
    params_s1 = init_params(k_p1, in_channel=4, out_channel=4, stride=1)
    out1 = inverted_residual_forward(x, params_s1, stride=1)
    jax.block_until_ready(out1)
    ref1 = ref_forward(x, params_s1, stride=1)
    assert out1.shape == (2, 4, 16, 16)
    assert jnp.allclose(out1, ref1, atol=1e-4, rtol=1e-4), \
        float(jnp.max(jnp.abs(out1 - ref1)))

    # Case 2: stride=2 (16x16 -> 8x8), tiny channels.
    params_s2 = init_params(k_p2, in_channel=4, out_channel=8, stride=2)
    out2 = inverted_residual_forward(x, params_s2, stride=2)
    jax.block_until_ready(out2)
    ref2 = ref_forward(x, params_s2, stride=2)
    assert out2.shape == (2, 8, 8, 8)
    assert jnp.allclose(out2, ref2, atol=1e-4, rtol=1e-4), \
        float(jnp.max(jnp.abs(out2 - ref2)))

    # Case 3: batch=8 exercises the multi-image-per-grid-step tiling (B_TILE=4).
    x8 = jax.random.normal(k_x3, (8, 4, 16, 16), jnp.float32)
    out3 = inverted_residual_forward(x8, params_s1, stride=1)
    jax.block_until_ready(out3)
    ref3 = ref_forward(x8, params_s1, stride=1)
    assert out3.shape == (8, 4, 16, 16)
    assert jnp.allclose(out3, ref3, atol=1e-4, rtol=1e-4), \
        float(jnp.max(jnp.abs(out3 - ref3)))

    # Cases 4/5: larger channel counts exercise the bf16 MXU matmul path.
    x_big = jax.random.normal(k_x2, (2, 32, 16, 16), jnp.float32)

    params_s1_big = init_params(k_p3, in_channel=32, out_channel=32, stride=1)
    out4 = inverted_residual_forward(x_big, params_s1_big, stride=1)
    jax.block_until_ready(out4)
    ref4 = ref_forward(x_big, params_s1_big, stride=1)
    assert out4.shape == (2, 32, 16, 16)
    rel4 = float(jnp.max(jnp.abs(out4 - ref4)) / (jnp.max(jnp.abs(ref4)) + 1e-6))
    assert rel4 < 5e-2, rel4

    params_s2_big = init_params(k_p4, in_channel=32, out_channel=64, stride=2)
    out5 = inverted_residual_forward(x_big, params_s2_big, stride=2)
    jax.block_until_ready(out5)
    ref5 = ref_forward(x_big, params_s2_big, stride=2)
    assert out5.shape == (2, 64, 8, 8)
    rel5 = float(jnp.max(jnp.abs(out5 - ref5)) / (jnp.max(jnp.abs(ref5)) + 1e-6))
    assert rel5 < 5e-2, rel5

    print("KERNEL_OK")
</pallas_src>

<mosaic_0001>
module attributes {stable_mosaic.version = 11 : i64} {
  func.func @probe(%arg0: memref<8x128xf32, #tpu.memory_space<vmem>>, %arg1: memref<8x128xf32, #tpu.memory_space<vmem>>) attributes {dimension_semantics = [], scalar_prefetch = 0 : i64, scratch_operands = 0 : i64, tpu.core_type = #tpu.core_type<tc>} {
    %c0 = arith.constant 0 : index
    %c0_0 = arith.constant 0 : index
    %0 = vector.load %arg0[%c0, %c0_0] : memref<8x128xf32, #tpu.memory_space<vmem>>, vector<8x128xf32>
    %c1_i32 = arith.constant 1 : i32
    %1 = tpu.dynamic_rotate %0 by %c1_i32 dim 1 : vector<8x128xf32>, i32 -> vector<8x128xf32>
    %c0_1 = arith.constant 0 : index
    %c0_2 = arith.constant 0 : index
    %2 = vector.load %arg1[%c0_1, %c0_2] : memref<8x128xf32, #tpu.memory_space<vmem>>, vector<8x128xf32>
    tpu.vector_store %arg1[%c0_1, %c0_2], %1 {strides = array<i32>} : memref<8x128xf32, #tpu.memory_space<vmem>>, vector<8x128xf32>,
    return
  }
}

</mosaic_0001>

<llo_original>
// kernel: tpu_custom_call.1
$region0: #{tpu_custom_call.1}
  #allocation0 [shape = 'u32[]', space=smem, size = 0x4, offset = 0x4, fixed_abs, tag = 'smem constant byte address 0x4 - core index']
  #allocation1 [shape = 'u32[72,128]{1,0:T(1,128)}', space=vmem, size = 0x9000, scoped, tag = 'internal scratch']
  %s0 = inlined_call_operand.hbm [shape: f32[8,128], index: 0, kind: input, shape index: {}]
  %s1 = inlined_call_operand.hbm [shape: f32[8,128], index: 1, kind: output, shape index: {}]
  %s2 = sld [smem:[#allocation0]]
  $region18: #{tpu_custom_call.1} parent=0
    _
  %s4 = ssub.s32 1, %s2
  %s5 = scalar_select 0, %s4, %s2
  $region1: #{tpu_custom_call.1} parent=0
    #allocation2 [shape = 'u8[4096]{0}', space=vmem, size = 0x1000, scoped, tag = 'input window, operand 0, single buffered']
    #allocation3 [shape = 's32[1]{0}', space=sflag, size = 0x4, scoped, tag = 'scoped memory for tpu_custom_call.1']
    #allocation4 [shape = 's32[1]{0}', space=sflag, size = 0x4, scoped, tag = 'scoped memory for tpu_custom_call.1']
    #allocation5 [shape = 'u8[4096]{0}', space=vmem, size = 0x1000, scoped, tag = 'output window, operand 0, single buffered']
    %6 = vsyncpa [#allocation3], 0
    %7 = vsyncpa [#allocation4], 0
    // Predicated region
    $region2: #{tpu_custom_call.1} parent=1 // pred_check
      _
    $region3: #{tpu_custom_call.1} parent=1 // pred_check_branch
      %9 = sbr.rel (0) target = $region5
    $region4: #{tpu_custom_call.1} parent=1 // pred_region
      %11 = vsyncadd [#allocation3], 0
      %s13 = sshll.u32 %s0, 4
      %s14 = int_to_ptr.hbm [resolvable:$true] %s13
      %s15 = sshll.u32 [#allocation2], 4
      %s16 = int_to_ptr.vmem [resolvable:$true] %s15
      %18 = dma.hbm_to_vmem [thread:$0]  %s14, 128, %s16, [#allocation3]
    $region5: #{tpu_custom_call.1} parent=1 // pred_fallthru
      _
    // Predicated region
    $region6: #{tpu_custom_call.1} parent=1 // pred_check
      _
    $region7: #{tpu_custom_call.1} parent=1 // pred_check_branch
      %20 = sbr.rel (0) target = $region9
    $region8: #{tpu_custom_call.1} parent=1 // pred_region
      %22 = dma.done [#allocation3], 128
    $region9: #{tpu_custom_call.1} parent=1 // pred_fallthru
      _
    %v23 = vld [vmem:[#allocation2] sm:$0xff]
    %24 = vrot.lane.b32.xlu0 %v23, 1
    %v25 = vpop.permute.xlu0 %24
    %26 = vst [vmem:[#allocation5] sm:$0xff] %v25
    // Predicated region
    $region10: #{tpu_custom_call.1} parent=1 // pred_check
      _
    $region11: #{tpu_custom_call.1} parent=1 // pred_check_branch
      %28 = sbr.rel (0) target = $region13
    $region12: #{tpu_custom_call.1} parent=1 // pred_region
      %30 = vsyncadd [#allocation4], 0
      %s32 = sshll.u32 [#allocation5], 4
      %s33 = int_to_ptr.vmem [resolvable:$true] %s32
      %s34 = sshll.u32 %s1, 4
      %s35 = int_to_ptr.hbm [resolvable:$true] %s34
      %37 = dma.vmem_to_hbm [thread:$0]  %s33, 128, %s35, [#allocation4]
    $region13: #{tpu_custom_call.1} parent=1 // pred_fallthru
      _
    // Predicated region
    $region14: #{tpu_custom_call.1} parent=1 // pred_check
      _
    $region15: #{tpu_custom_call.1} parent=1 // pred_check_branch
      %39 = sbr.rel (0) target = $region17
    $region16: #{tpu_custom_call.1} parent=1 // pred_region
      %41 = dma.done [#allocation4], 128
    $region17: #{tpu_custom_call.1} parent=1 // pred_fallthru
      _
    %42 = vsyncpa [#allocation3], 1
    %43 = vsyncpa [#allocation4], 1

</llo_original>
